<compile_context>
chip_gen: v7x
topology: tpu7x:2x2x1
jax: 0.10.0
libtpu: 0.0.40
codegen_flags: <defaults>
</compile_context>

<pallas_src>
import functools
import math

import jax
import jax.numpy as jnp
from jax.experimental import pallas as pl
from jax.experimental.pallas import tpu as pltpu


def _dice_kernel(p_ref, t_ref, o_ref, top_acc, bot_acc, *, eps):
    # p_ref, t_ref: (ROW_TILE, S_TILE) VMEM tiles
    # o_ref:        (ROW_TILE, 1)
    # top_acc/bot_acc: (ROW_TILE, 1) f32 scratch, resident across the S axis.
    k = pl.program_id(1)

    @pl.when(k == 0)
    def _():
        top_acc[...] = jnp.zeros_like(top_acc)
        bot_acc[...] = jnp.zeros_like(bot_acc)

    # Accumulate in float32 regardless of input dtype (bf16-safe, v5e-friendly).
    p = p_ref[...].astype(jnp.float32)
    t = t_ref[...].astype(jnp.float32)
    top_acc[...] += jnp.sum(t * p, axis=-1, keepdims=True)
    bot_acc[...] += jnp.sum(t + p, axis=-1, keepdims=True)

    @pl.when(k == pl.num_programs(1) - 1)
    def _():
        top = 2.0 * top_acc[...]
        bottom = jnp.maximum(bot_acc[...], eps)  # torch.clamp(..., min=eps)
        o_ref[...] = (1.0 - top / bottom).astype(o_ref.dtype)


def dice_loss(pred, target, *, row_tile=None, s_tile=None):
    """Pallas implementation of Dice.forward(pred, target) -> (N, C)."""
    assert pred.shape == target.shape
    assert pred.ndim >= 3, "expect (N, C, *spatial)"
    n, c = pred.shape[0], pred.shape[1]
    s = math.prod(pred.shape[2:])
    r = n * c

    # Flatten so the reduction axis is the lane axis and rows pack sublanes.
    p = pred.reshape(r, s)
    t = target.reshape(r, s)

    eps = float(jnp.finfo(pred.dtype).eps)

    # Sublane packing: 8 rows/vreg for f32, 16 for 16-bit dtypes.
    sub = 8 if pred.dtype == jnp.float32 else 16

    # Tile sizing: modest defaults that stay far under scoped-VMEM budgets on
    # v5e (16 MiB) / v6e (32 MiB) / v7x (32 MiB scoped, 64 MiB physical) even
    # with 2 inputs x 2 pipeline buffers.
    if row_tile is None:
        row_tile = min(64, pl.cdiv(r, sub) * sub)
    row_tile = max(sub, (row_tile // sub) * sub)
    if s_tile is None:
        s_tile = min(2048, pl.cdiv(s, 128) * 128)
    s_tile = max(128, (s_tile // 128) * 128)

    # Zero-pad up to tile multiples (zeros are neutral for both sums; padded
    # rows are sliced away below).
    r_pad = pl.cdiv(r, row_tile) * row_tile
    s_pad = pl.cdiv(s, s_tile) * s_tile
    if r_pad != r or s_pad != s:
        p = jnp.pad(p, ((0, r_pad - r), (0, s_pad - s)))
        t = jnp.pad(t, ((0, r_pad - r), (0, s_pad - s)))

    grid = (r_pad // row_tile, s_pad // s_tile)

    out = pl.pallas_call(
        functools.partial(_dice_kernel, eps=eps),
        out_shape=jax.ShapeDtypeStruct((r_pad, 1), pred.dtype),
        grid_spec=pltpu.PrefetchScalarGridSpec(
            num_scalar_prefetch=0,
            grid=grid,
            in_specs=[
                pl.BlockSpec((row_tile, s_tile), lambda i, k: (i, k)),
                pl.BlockSpec((row_tile, s_tile), lambda i, k: (i, k)),
            ],
            out_specs=pl.BlockSpec((row_tile, 1), lambda i, k: (i, 0)),
            scratch_shapes=[
                pltpu.VMEM((row_tile, 1), jnp.float32),
                pltpu.VMEM((row_tile, 1), jnp.float32),
            ],
        ),
        compiler_params=pltpu.CompilerParams(
            dimension_semantics=("parallel", "arbitrary"),
        ),
    )(p, t)

    return out[:r, 0].reshape(n, c)


def dice_loss_ref(pred, target):
    """Pure-JAX reference matching the PyTorch module."""
    eps = jnp.finfo(pred.dtype).eps
    spatial = tuple(range(2, pred.ndim))
    top = 2.0 * jnp.sum(target * pred, axis=spatial)
    bottom = jnp.maximum(jnp.sum(target + pred, axis=spatial), eps)
    return 1.0 - top / bottom


if __name__ == "__main__":
    key = jax.random.PRNGKey(0)
    k1, k2 = jax.random.split(key)
    # Small NCHW shapes: batch=2, channels=4, spatial=16x16
    pred = jax.nn.softmax(jax.random.normal(k1, (2, 4, 16, 16), jnp.float32), axis=1)
    target = (jax.random.uniform(k2, (2, 4, 16, 16), jnp.float32) > 0.5).astype(jnp.float32)

    out = dice_loss(pred, target)
    jax.block_until_ready(out)

    ref = dice_loss_ref(pred, target)
    assert out.shape == (2, 4)
    assert jnp.allclose(out, ref, atol=1e-5, rtol=1e-5), (out, ref)

    print("KERNEL_OK")
</pallas_src>

<mosaic_0001>
module attributes {stable_mosaic.version = 11 : i64} {
  func.func @_dice_kernel(%arg0: i32, %arg1: i32, %arg2: memref<8x256xf32, #tpu.memory_space<vmem>>, %arg3: memref<8x256xf32, #tpu.memory_space<vmem>>, %arg4: memref<8x1xf32, #tpu.memory_space<vmem>>, %arg5: memref<8x1xf32, #tpu.memory_space<vmem>>, %arg6: memref<8x1xf32, #tpu.memory_space<vmem>>) attributes {dimension_semantics = [#tpu.dimension_semantics<parallel>, #tpu.dimension_semantics<arbitrary>], iteration_bounds = array<i64: 1, 1>, scalar_prefetch = 0 : i64, scratch_operands = 2 : i64, tpu.core_type = #tpu.core_type<tc>, window_params = [{transform_indices = @transform_0, window_bounds = array<i64: 8, 256>}, {transform_indices = @transform_1, window_bounds = array<i64: 8, 256>}, {transform_indices = @transform_2, window_bounds = array<i64: 8, 1>}]} {
    %c0_i32 = arith.constant 0 : i32
    %0 = arith.cmpi eq, %arg1, %c0_i32 : i32
    %1 = arith.extui %0 : i1 to i32
    %c0_i32_0 = arith.constant 0 : i32
    %2 = arith.cmpi ne, %1, %c0_i32_0 : i32
    scf.if %2 {
      %cst_15 = arith.constant 0.000000e+00 : f32
      %20 = vector.broadcast %cst_15 : f32 to vector<8x1xf32>
      %c0_16 = arith.constant 0 : index
      %c0_17 = arith.constant 0 : index
      %21 = vector.load %arg5[%c0_16, %c0_17] : memref<8x1xf32, #tpu.memory_space<vmem>>, vector<8x1xf32>
      tpu.vector_store %arg5[%c0_16, %c0_17], %20 {strides = array<i32>} : memref<8x1xf32, #tpu.memory_space<vmem>>, vector<8x1xf32>,
      %cst_18 = arith.constant 0.000000e+00 : f32
      %22 = vector.broadcast %cst_18 : f32 to vector<8x1xf32>
      %c0_19 = arith.constant 0 : index
      %c0_20 = arith.constant 0 : index
      %23 = vector.load %arg6[%c0_19, %c0_20] : memref<8x1xf32, #tpu.memory_space<vmem>>, vector<8x1xf32>
      tpu.vector_store %arg6[%c0_19, %c0_20], %22 {strides = array<i32>} : memref<8x1xf32, #tpu.memory_space<vmem>>, vector<8x1xf32>,
    } else {
    }
    %c0 = arith.constant 0 : index
    %c0_1 = arith.constant 0 : index
    %3 = vector.load %arg2[%c0, %c0_1] : memref<8x256xf32, #tpu.memory_space<vmem>>, vector<8x256xf32>
    %c0_2 = arith.constant 0 : index
    %c0_3 = arith.constant 0 : index
    %4 = vector.load %arg3[%c0_2, %c0_3] : memref<8x256xf32, #tpu.memory_space<vmem>>, vector<8x256xf32>
    %c0_4 = arith.constant 0 : index
    %c0_5 = arith.constant 0 : index
    %5 = vector.load %arg5[%c0_4, %c0_5] : memref<8x1xf32, #tpu.memory_space<vmem>>, vector<8x1xf32>
    %6 = arith.mulf %4, %3 : vector<8x256xf32>
    %cst = arith.constant dense<0.000000e+00> : vector<8xf32>
    %7 = vector.multi_reduction <add>, %6, %cst [1] : vector<8x256xf32> to vector<8xf32>
    %8 = vector.shape_cast %7 : vector<8xf32> to vector<8x1xf32>
    %9 = arith.addf %5, %8 : vector<8x1xf32>
    %c0_6 = arith.constant 0 : index
    %c0_7 = arith.constant 0 : index
    %10 = vector.load %arg5[%c0_6, %c0_7] : memref<8x1xf32, #tpu.memory_space<vmem>>, vector<8x1xf32>
    tpu.vector_store %arg5[%c0_6, %c0_7], %9 {strides = array<i32>} : memref<8x1xf32, #tpu.memory_space<vmem>>, vector<8x1xf32>,
    %c0_8 = arith.constant 0 : index
    %c0_9 = arith.constant 0 : index
    %11 = vector.load %arg6[%c0_8, %c0_9] : memref<8x1xf32, #tpu.memory_space<vmem>>, vector<8x1xf32>
    %12 = arith.addf %4, %3 : vector<8x256xf32>
    %cst_10 = arith.constant dense<0.000000e+00> : vector<8xf32>
    %13 = vector.multi_reduction <add>, %12, %cst_10 [1] : vector<8x256xf32> to vector<8xf32>
    %14 = vector.shape_cast %13 : vector<8xf32> to vector<8x1xf32>
    %15 = arith.addf %11, %14 : vector<8x1xf32>
    %c0_11 = arith.constant 0 : index
    %c0_12 = arith.constant 0 : index
    %16 = vector.load %arg6[%c0_11, %c0_12] : memref<8x1xf32, #tpu.memory_space<vmem>>, vector<8x1xf32>
    tpu.vector_store %arg6[%c0_11, %c0_12], %15 {strides = array<i32>} : memref<8x1xf32, #tpu.memory_space<vmem>>, vector<8x1xf32>,
    %c0_i32_13 = arith.constant 0 : i32
    %17 = arith.cmpi eq, %arg1, %c0_i32_13 : i32
    %18 = arith.extui %17 : i1 to i32
    %c0_i32_14 = arith.constant 0 : i32
    %19 = arith.cmpi ne, %18, %c0_i32_14 : i32
    scf.if %19 {
      %c0_15 = arith.constant 0 : index
      %c0_16 = arith.constant 0 : index
      %20 = vector.load %arg5[%c0_15, %c0_16] : memref<8x1xf32, #tpu.memory_space<vmem>>, vector<8x1xf32>
      %cst_17 = arith.constant 2.000000e+00 : f32
      %21 = vector.broadcast %cst_17 : f32 to vector<8x1xf32>
      %22 = arith.mulf %21, %20 : vector<8x1xf32>
      %c0_18 = arith.constant 0 : index
      %c0_19 = arith.constant 0 : index
      %23 = vector.load %arg6[%c0_18, %c0_19] : memref<8x1xf32, #tpu.memory_space<vmem>>, vector<8x1xf32>
      %cst_20 = arith.constant 1.1920929E-7 : f32
      %24 = vector.broadcast %cst_20 : f32 to vector<8x1xf32>
      %25 = arith.maximumf %23, %24 : vector<8x1xf32>
      %26 = arith.divf %22, %25 : vector<8x1xf32>
      %cst_21 = arith.constant 1.000000e+00 : f32
      %27 = vector.broadcast %cst_21 : f32 to vector<8x1xf32>
      %28 = arith.subf %27, %26 : vector<8x1xf32>
      %c0_22 = arith.constant 0 : index
      %c0_23 = arith.constant 0 : index
      %29 = vector.load %arg4[%c0_22, %c0_23] : memref<8x1xf32, #tpu.memory_space<vmem>>, vector<8x1xf32>
      tpu.vector_store %arg4[%c0_22, %c0_23], %28 {strides = array<i32>} : memref<8x1xf32, #tpu.memory_space<vmem>>, vector<8x1xf32>,
    } else {
    }
    return
  }
  func.func @transform_0(%arg0: i32, %arg1: i32) -> (i32, i32) {
    %c0_i32 = arith.constant 0 : i32
    return %arg0, %arg1 : i32, i32
  }
  func.func @transform_1(%arg0: i32, %arg1: i32) -> (i32, i32) {
    %c0_i32 = arith.constant 0 : i32
    return %arg0, %arg1 : i32, i32
  }
  func.func @transform_2(%arg0: i32, %arg1: i32) -> (i32, i32) {
    %c0_i32 = arith.constant 0 : i32
    %c0_i32_0 = arith.constant 0 : i32
    return %arg0, %c0_i32 : i32, i32
  }
}

</mosaic_0001>

<llo_original>
// kernel: tpu_custom_call.1
$region0: #{tpu_custom_call.1}
  #allocation0 [shape = 'u32[]', space=smem, size = 0x4, offset = 0x4, fixed_abs, tag = 'smem constant byte address 0x4 - core index']
  #allocation1 [shape = 'u32[144,128]{1,0:T(1,128)}', space=vmem, size = 0x12000, scoped, tag = 'internal scratch']
  #allocation2 [shape = 'f32[8,1]{1,0:T(8,128)}', space=vmem, size = 0x1000, scoped, tag = 'scratch operand']
  #allocation3 [shape = 'f32[8,1]{1,0:T(8,128)}', space=vmem, size = 0x1000, scoped, tag = 'scratch operand']
  %s0 = inlined_call_operand.hbm [shape: f32[8,256], index: 0, kind: input, shape index: {}]
  %s1 = inlined_call_operand.hbm [shape: f32[8,256], index: 1, kind: input, shape index: {}]
  %s2 = inlined_call_operand.vmem [shape: f32[8,1], index: 2, kind: output, shape index: {}]
  %s3 = sld [smem:[#allocation0]]
  $region34: #{tpu_custom_call.1} parent=0
    _
  %s5 = ssub.s32 1, %s3
  %s6 = scalar_select 0, %s5, %s3
  $region1: #{tpu_custom_call.1} parent=0
    #allocation4 [shape = 'u8[8192]{0}', space=vmem, size = 0x2000, scoped, tag = 'input window, operand 0, single buffered']
    #allocation5 [shape = 's32[1]{0}', space=sflag, size = 0x4, scoped, tag = 'scoped memory for tpu_custom_call.1']
    #allocation6 [shape = 'u8[8192]{0}', space=vmem, size = 0x2000, scoped, tag = 'input window, operand 1, single buffered']
    #allocation7 [shape = 's32[1]{0}', space=sflag, size = 0x4, scoped, tag = 'scoped memory for tpu_custom_call.1']
    %7 = vsyncpa [#allocation5], 0
    %8 = vsyncpa [#allocation7], 0
    // Predicated region
    $region2: #{tpu_custom_call.1} parent=1 // pred_check
      _
    $region3: #{tpu_custom_call.1} parent=1 // pred_check_branch
      %10 = sbr.rel (0) target = $region5
    $region4: #{tpu_custom_call.1} parent=1 // pred_region
      %s12 = ssub.s32 256, 256
      %13 = vsyncadd [#allocation5], %s12
      %s15 = sshll.u32 [#allocation4], 4
      %s16 = int_to_ptr.vmem [resolvable:$true] %s15
      %18 = dma.hbm_to_vmem [thread:$0]  %s0, 256, %s16, [#allocation5]
    $region5: #{tpu_custom_call.1} parent=1 // pred_fallthru
      _
    // Predicated region
    $region6: #{tpu_custom_call.1} parent=1 // pred_check
      _
    $region7: #{tpu_custom_call.1} parent=1 // pred_check_branch
      %20 = sbr.rel (0) target = $region9
    $region8: #{tpu_custom_call.1} parent=1 // pred_region
      %s22 = ssub.s32 256, 256
      %23 = vsyncadd [#allocation7], %s22
      %s25 = sshll.u32 [#allocation6], 4
      %s26 = int_to_ptr.vmem [resolvable:$true] %s25
      %28 = dma.hbm_to_vmem [thread:$0]  %s1, 256, %s26, [#allocation7]
    $region9: #{tpu_custom_call.1} parent=1 // pred_fallthru
      _
    // Predicated region
    $region10: #{tpu_custom_call.1} parent=1 // pred_check
      _
    $region11: #{tpu_custom_call.1} parent=1 // pred_check_branch
      %30 = sbr.rel (0) target = $region13
    $region12: #{tpu_custom_call.1} parent=1 // pred_region
      %31 = dma.done [#allocation5], 256
    $region13: #{tpu_custom_call.1} parent=1 // pred_fallthru
      _
    // Predicated region
    $region14: #{tpu_custom_call.1} parent=1 // pred_check
      _
    $region15: #{tpu_custom_call.1} parent=1 // pred_check_branch
      %33 = sbr.rel (0) target = $region17
    $region16: #{tpu_custom_call.1} parent=1 // pred_region
      %34 = dma.done [#allocation7], 256
    $region17: #{tpu_custom_call.1} parent=1 // pred_fallthru
      _
    %p35 = scmp.eq.s32.totalorder 0, 0
    // Predicated region
    $region18: #{tpu_custom_call.1} parent=1 // pred_check
      %p36 = pneg %p35
    $region19: #{tpu_custom_call.1} parent=1 // pred_check_branch
      %38 = sbr.rel (%p36) target = $region21
    $region20: #{tpu_custom_call.1} parent=1 // pred_region
      %vm39 = vcmask 7168
      %40 = vst.msk [vmem:[#allocation2] sm:$0xff] %vm39, 0.0
      %41 = vst.msk [vmem:[#allocation3] sm:$0xff] %vm39, 0.0
    $region21: #{tpu_custom_call.1} parent=1 // pred_fallthru
      _
    %v42 = vld [vmem:[#allocation4] sm:$0xff]
    %v43 = vld [vmem:[#allocation4 + $0x8] sm:$0xff]
    %v44 = vld [vmem:[#allocation6] sm:$0xff]
    %v45 = vld [vmem:[#allocation6 + $0x8] sm:$0xff]
    %v46 = vld [vmem:[#allocation2] sm:$0xff]
    %v47 = vmul.f32 %v44, %v42
    %v48 = vmul.f32 %v45, %v43
    %v49 = vadd.f32 %v47, %v48
    %50 = vadd.xlane.f32.xlu0 %v49
    %v51 = vpop.xlane.xlu0 %50
    %v52 = vadd.f32 %v46, %v51
    %vm53 = vcmask 7168
    %54 = vst.msk [vmem:[#allocation2] sm:$0xff] %vm53, %v52
    %v55 = vld [vmem:[#allocation3] sm:$0xff]
    %v56 = vadd.f32 %v44, %v42
    %v57 = vadd.f32 %v45, %v43
    %v58 = vadd.f32 %v56, %v57
    %59 = vadd.xlane.f32.xlu0 %v58
    %v60 = vpop.xlane.xlu0 %59
    %v61 = vadd.f32 %v55, %v60
    %62 = vst.msk [vmem:[#allocation3] sm:$0xff] %vm53, %v61
    // Predicated region
    $region22: #{tpu_custom_call.1} parent=1 // pred_check
      %p63 = pneg %p35
    $region23: #{tpu_custom_call.1} parent=1 // pred_check_branch
      %65 = sbr.rel (%p63) target = $region25
    $region24: #{tpu_custom_call.1} parent=1 // pred_region
      %v66 = vld [vmem:[#allocation2] sm:$0xff]
      %v67 = vmul.f32 %v66, 2.0
      %v68 = vld [vmem:[#allocation3] sm:$0xff]
      %v69 = vmax.f32 %v68, 1.1920929e-07
      %v70 = vrcp.pop %v69
      %v71 = vmul.f32 %v67, %v70
      %v72 = vsub.f32 1.0, %v71
      %73 = vst.msk [vmem:[%s2] sm:$0xff] %vm53, %v72
    $region25: #{tpu_custom_call.1} parent=1 // pred_fallthru
      _
    // Predicated region
    $region26: #{tpu_custom_call.1} parent=1 // pred_check
      _
    $region27: #{tpu_custom_call.1} parent=1 // pred_check_branch
      %75 = sbr.rel (0) target = $region29
    $region28: #{tpu_custom_call.1} parent=1 // pred_region
      _
    $region29: #{tpu_custom_call.1} parent=1 // pred_fallthru
      _
    // Predicated region
    $region30: #{tpu_custom_call.1} parent=1 // pred_check
      _
    $region31: #{tpu_custom_call.1} parent=1 // pred_check_branch
      %77 = sbr.rel (0) target = $region33
    $region32: #{tpu_custom_call.1} parent=1 // pred_region
      _
    $region33: #{tpu_custom_call.1} parent=1 // pred_fallthru
      _
    %78 = vsyncpa [#allocation5], 1
    %79 = vsyncpa [#allocation7], 1

</llo_original>
